<compile_context>
chip_gen: v5e
topology: v5e:2x2
jax: 0.10.0
libtpu: 0.0.40
codegen_flags: <defaults>
</compile_context>

<pallas_src>
import functools

import jax
import jax.numpy as jnp
from jax.experimental import pallas as pl
from jax.experimental.pallas import tpu as pltpu


F_PAD = 128  # lane-dense feature width (one full vreg lane dimension)


def block_kernel(x_ref, w2_ref, b2_ref, w1_ref, b1_ref, o_ref):
    # x_ref: (tm, F_PAD) tile of rows; weights/biases are full, VMEM-resident.
    x = x_ref[...]  # already f32 — no extra cast

    # L2: x @ W2^T + b2  (W2 pre-transposed to (in, out))
    h = jnp.tanh(
        jnp.dot(x, w2_ref[...], preferred_element_type=jnp.float32) + b2_ref[...]
    )
    # L1: h @ W1^T + b1
    h = jnp.tanh(
        jnp.dot(h, w1_ref[...], preferred_element_type=jnp.float32) + b1_ref[...]
    )
    # residual connection
    o_ref[...] = (h + x).astype(o_ref.dtype)


def prepare_block_params(w1, b1, w2, b2):
    """One-time conversion of PyTorch-layout params (out,in)/(out,) into
    pre-transposed, lane-padded kernel layout. Do this at init, not per call."""
    F = w1.shape[0]
    f32 = jnp.float32
    w1t = jnp.zeros((F_PAD, F_PAD), f32).at[:F, :F].set(w1.T.astype(f32))
    w2t = jnp.zeros((F_PAD, F_PAD), f32).at[:F, :F].set(w2.T.astype(f32))
    b1p = jnp.zeros((1, F_PAD), f32).at[0, :F].set(b1.astype(f32))
    b2p = jnp.zeros((1, F_PAD), f32).at[0, :F].set(b2.astype(f32))
    return (w1t, b1p, w2t, b2p)


@functools.partial(jax.jit, static_argnames=("tm",))
def block_forward(x, kernel_params, tm=32):
    """x: (B, F) f32. kernel_params: output of prepare_block_params."""
    w1t, b1p, w2t, b2p = kernel_params
    B, F = x.shape
    Bp = ((B + tm - 1) // tm) * tm  # pad rows to a whole number of tiles

    # Pad once inside the jit: rows -> multiple of tm, features -> F_PAD lanes.
    x_pad = jnp.zeros((Bp, F_PAD), x.dtype).at[:B, :F].set(x)

    out_pad = pl.pallas_call(
        block_kernel,
        out_shape=jax.ShapeDtypeStruct((Bp, F_PAD), x.dtype),
        grid_spec=pltpu.PrefetchScalarGridSpec(
            num_scalar_prefetch=0,
            grid=(Bp // tm,),
            in_specs=[
                # x: streamed, one (tm, F_PAD) tile per grid step
                pl.BlockSpec((tm, F_PAD), lambda i: (i, 0)),
                # weights / biases: constant index_map -> resident across steps
                pl.BlockSpec((F_PAD, F_PAD), lambda i: (0, 0)),
                pl.BlockSpec((1, F_PAD), lambda i: (0, 0)),
                pl.BlockSpec((F_PAD, F_PAD), lambda i: (0, 0)),
                pl.BlockSpec((1, F_PAD), lambda i: (0, 0)),
            ],
            out_specs=pl.BlockSpec((tm, F_PAD), lambda i: (i, 0)),
        ),
        compiler_params=pltpu.CompilerParams(
            dimension_semantics=("parallel",),  # shard batch tiles across TCs (v7x)
        ),
    )(x_pad, w2t, b2p, w1t, b1p)

    return out_pad[:B, :F]


def reference_forward(x, w1, b1, w2, b2):
    # Pure-JAX reference mirroring PyTorch: tanh(L1(tanh(L2(x)))) + x
    h = jnp.tanh(x @ w2.T + b2)
    h = jnp.tanh(h @ w1.T + b1)
    return h + x


if __name__ == "__main__":
    key = jax.random.PRNGKey(0)
    k_x, k_w1, k_b1, k_w2, k_b2 = jax.random.split(key, 5)

    batch, inputs = 64, 32  # Linear(inputs, inputs); batch tiled by the grid

    x = jax.random.normal(k_x, (batch, inputs), dtype=jnp.float32)

    # Deterministic parameter init (mimics nn.Linear uniform(-1/sqrt(in), 1/sqrt(in)))
    bound = 1.0 / (inputs ** 0.5)
    w1 = jax.random.uniform(k_w1, (inputs, inputs), minval=-bound, maxval=bound, dtype=jnp.float32)
    b1 = jax.random.uniform(k_b1, (inputs,), minval=-bound, maxval=bound, dtype=jnp.float32)
    w2 = jax.random.uniform(k_w2, (inputs, inputs), minval=-bound, maxval=bound, dtype=jnp.float32)
    b2 = jax.random.uniform(k_b2, (inputs,), minval=-bound, maxval=bound, dtype=jnp.float32)

    # One-time parameter layout conversion (done at "module init" time).
    kernel_params = prepare_block_params(w1, b1, w2, b2)

    out = block_forward(x, kernel_params, tm=32)
    out = jax.block_until_ready(out)

    ref = reference_forward(x, w1, b1, w2, b2)
    assert out.shape == (batch, inputs)
    assert jnp.allclose(out, ref, atol=1e-5, rtol=1e-5), "mismatch vs reference"

    print("KERNEL_OK")
</pallas_src>

<mosaic_0001>
module attributes {stable_mosaic.version = 11 : i64} {
  func.func @block_kernel(%arg0: i32, %arg1: memref<32x128xf32, #tpu.memory_space<vmem>>, %arg2: memref<128x128xf32, #tpu.memory_space<vmem>>, %arg3: memref<1x128xf32, #tpu.memory_space<vmem>>, %arg4: memref<128x128xf32, #tpu.memory_space<vmem>>, %arg5: memref<1x128xf32, #tpu.memory_space<vmem>>, %arg6: memref<32x128xf32, #tpu.memory_space<vmem>>) attributes {dimension_semantics = [#tpu.dimension_semantics<parallel>], iteration_bounds = array<i64: 2>, scalar_prefetch = 0 : i64, scratch_operands = 0 : i64, tpu.core_type = #tpu.core_type<tc>, window_params = [{transform_indices = @transform_0, window_bounds = array<i64: 32, 128>}, {pipeline_mode = #tpu.pipeline_mode<synchronous>, transform_indices = @transform_1, window_bounds = array<i64: 128, 128>}, {pipeline_mode = #tpu.pipeline_mode<synchronous>, transform_indices = @transform_2, window_bounds = array<i64: 1, 128>}, {pipeline_mode = #tpu.pipeline_mode<synchronous>, transform_indices = @transform_3, window_bounds = array<i64: 128, 128>}, {pipeline_mode = #tpu.pipeline_mode<synchronous>, transform_indices = @transform_4, window_bounds = array<i64: 1, 128>}, {transform_indices = @transform_5, window_bounds = array<i64: 32, 128>}]} {
    %c0 = arith.constant 0 : index
    %c0_0 = arith.constant 0 : index
    %0 = vector.load %arg1[%c0, %c0_0] : memref<32x128xf32, #tpu.memory_space<vmem>>, vector<32x128xf32>
    %c0_1 = arith.constant 0 : index
    %c0_2 = arith.constant 0 : index
    %1 = vector.load %arg2[%c0_1, %c0_2] : memref<128x128xf32, #tpu.memory_space<vmem>>, vector<128x128xf32>
    %cst = arith.constant dense<0.000000e+00> : vector<32x128xf32>
    %2 = tpu.matmul %0, %1, %cst {dimension_numbers = #tpu.dot_dimension_numbers<[1], [0], [0], [1], [0, 0, 1, 1], [], []>} : vector<32x128xf32>, vector<128x128xf32>, vector<32x128xf32> -> vector<32x128xf32>
    %c0_3 = arith.constant 0 : index
    %c0_4 = arith.constant 0 : index
    %3 = vector.load %arg3[%c0_3, %c0_4] : memref<1x128xf32, #tpu.memory_space<vmem>>, vector<1x128xf32>
    %4 = vector.broadcast %3 : vector<1x128xf32> to vector<32x128xf32>
    %5 = arith.addf %2, %4 : vector<32x128xf32>
    %6 = math.tanh %5 : vector<32x128xf32>
    %c0_5 = arith.constant 0 : index
    %c0_6 = arith.constant 0 : index
    %7 = vector.load %arg4[%c0_5, %c0_6] : memref<128x128xf32, #tpu.memory_space<vmem>>, vector<128x128xf32>
    %cst_7 = arith.constant dense<0.000000e+00> : vector<32x128xf32>
    %8 = tpu.matmul %6, %7, %cst_7 {dimension_numbers = #tpu.dot_dimension_numbers<[1], [0], [0], [1], [0, 0, 1, 1], [], []>} : vector<32x128xf32>, vector<128x128xf32>, vector<32x128xf32> -> vector<32x128xf32>
    %c0_8 = arith.constant 0 : index
    %c0_9 = arith.constant 0 : index
    %9 = vector.load %arg5[%c0_8, %c0_9] : memref<1x128xf32, #tpu.memory_space<vmem>>, vector<1x128xf32>
    %10 = vector.broadcast %9 : vector<1x128xf32> to vector<32x128xf32>
    %11 = arith.addf %8, %10 : vector<32x128xf32>
    %12 = math.tanh %11 : vector<32x128xf32>
    %13 = arith.addf %12, %0 : vector<32x128xf32>
    %c0_10 = arith.constant 0 : index
    %c0_11 = arith.constant 0 : index
    %14 = vector.load %arg6[%c0_10, %c0_11] : memref<32x128xf32, #tpu.memory_space<vmem>>, vector<32x128xf32>
    tpu.vector_store %arg6[%c0_10, %c0_11], %13 {strides = array<i32>} : memref<32x128xf32, #tpu.memory_space<vmem>>, vector<32x128xf32>,
    return
  }
  func.func @transform_0(%arg0: i32) -> (i32, i32) {
    %c0_i32 = arith.constant 0 : i32
    %c0_i32_0 = arith.constant 0 : i32
    return %arg0, %c0_i32 : i32, i32
  }
  func.func @transform_1(%arg0: i32) -> (i32, i32) {
    %c0_i32 = arith.constant 0 : i32
    %c0_i32_0 = arith.constant 0 : i32
    %c0_i32_1 = arith.constant 0 : i32
    return %c0_i32, %c0_i32_0 : i32, i32
  }
  func.func @transform_2(%arg0: i32) -> (i32, i32) {
    %c0_i32 = arith.constant 0 : i32
    %c0_i32_0 = arith.constant 0 : i32
    %c0_i32_1 = arith.constant 0 : i32
    return %c0_i32, %c0_i32_0 : i32, i32
  }
  func.func @transform_3(%arg0: i32) -> (i32, i32) {
    %c0_i32 = arith.constant 0 : i32
    %c0_i32_0 = arith.constant 0 : i32
    %c0_i32_1 = arith.constant 0 : i32
    return %c0_i32, %c0_i32_0 : i32, i32
  }
  func.func @transform_4(%arg0: i32) -> (i32, i32) {
    %c0_i32 = arith.constant 0 : i32
    %c0_i32_0 = arith.constant 0 : i32
    %c0_i32_1 = arith.constant 0 : i32
    return %c0_i32, %c0_i32_0 : i32, i32
  }
  func.func @transform_5(%arg0: i32) -> (i32, i32) {
    %c0_i32 = arith.constant 0 : i32
    %c0_i32_0 = arith.constant 0 : i32
    return %arg0, %c0_i32 : i32, i32
  }
}

</mosaic_0001>

<llo_original>
// kernel: block_forward.1
$region0: #{block_forward.1}
  #allocation0 [shape = 'u32[]', space=smem, size = 0x4, offset = 0x4, fixed_abs, tag = 'smem constant byte address 0x4 - core index']
  #allocation1 [shape = 'u32[72,128]{1,0:T(1,128)}', space=vmem, size = 0x9000, scoped, tag = 'internal scratch']
  %s0 = inlined_call_operand.vmem [shape: f32[64,128], index: 0, kind: input, shape index: {}]
  %s1 = inlined_call_operand.vmem [shape: f32[128,128], index: 1, kind: input, shape index: {}]
  %s2 = inlined_call_operand.vmem [shape: f32[1,128], index: 2, kind: input, shape index: {}]
  %s3 = inlined_call_operand.vmem [shape: f32[128,128], index: 3, kind: input, shape index: {}]
  %s4 = inlined_call_operand.vmem [shape: f32[1,128], index: 4, kind: input, shape index: {}]
  %s5 = inlined_call_operand.vmem [shape: f32[64,128], index: 5, kind: output, shape index: {}]
  %s6 = sld [smem:[#allocation0]]
  $region53: #{block_forward.1} parent=0
    _
  %s8 = ssub.s32 1, %s6
  %s9 = scalar_select 0, %s8, %s6
  loop: start=0, step=1, limit=4
  $region2: #{block_forward.1} parent=0 // loop_pre_header
    _
  $region3: #{block_forward.1} parent=0 // loop_header
    %s11 = sphi 0, %s15
    %p12 = scmp.ge.s32.totalorder %s11, 4
    %s21 = sphi 0, %s23
    %s24 = sphi 0, %s21
    %s25 = sphi 0, %s24
    %s41 = sphi 0, %s25
    %s45 = sphi 0, %s45
    %s47 = sphi 0, %s45
    %s48 = sphi 0, %s47
    %s62 = sphi 0, %s48
    %s66 = sphi 0, %s66
    %s68 = sphi 0, %s66
    %s69 = sphi 0, %s68
    %s83 = sphi 0, %s69
    %s87 = sphi 0, %s87
    %s89 = sphi 0, %s87
    %s90 = sphi 0, %s89
    %s104 = sphi 0, %s90
    %s108 = sphi 0, %s108
    %s110 = sphi 0, %s108
    %s111 = sphi 0, %s110
    %s125 = sphi 0, %s111
    %s131 = sphi 0, %s133
    %s134 = sphi 0, %s131
    %s135 = sphi 0, %s134
    %s151 = sphi 0, %s135
  $region4: #{block_forward.1} parent=0 // loop_header_branch
    %14 = sbr.rel (%p12) target = $region8
  $region5: #{block_forward.1} parent=0 // loop_body
    %s16 = ssub.s32 %s11, 1
    %s17 = ssub.s32 %s11, 2
    %s18 = sadd.s32 %s11, 1
    %s19 = ssub.s32 %s11, %s18
    %p20 = scmp.eq.s32.totalorder %s19, 0
    %s22 = sadd.s32 %s21, 1
    %s23 = scalar_select %p20, %s21, %s22
    %p26 = pneg %p20
    %p27 = scmp.eq.s32.totalorder %s11, 1
    %p28 = por %p26, %p27
    %p29 = scmp.ne.s32.totalorder %s21, %s24
    %p30 = scmp.eq.s32.totalorder %s11, 0
    %p31 = por %p29, %p30
    %p32 = scmp.ne.s32.totalorder %s21, %s24
    %p33 = scmp.eq.s32.totalorder %s16, 1
    %p34 = por %p32, %p33
    %p35 = scmp.ne.s32.totalorder %s24, %s25
    %p36 = scmp.eq.s32.totalorder %s16, 0
    %p37 = por %p35, %p36
    %p38 = scmp.ne.s32.totalorder %s24, %s25
    %p39 = scmp.eq.s32.totalorder %s17, 1
    %p40 = por %p38, %p39
    %p42 = scmp.ne.s32.totalorder %s25, %s41
    %p43 = scmp.eq.s32.totalorder %s17, 0
    %p44 = por %p42, %p43
    %s46 = sadd.s32 %s45, 1
    %p49 = scmp.eq.s32.totalorder %s11, 1
    %p50 = scmp.ne.s32.totalorder %s45, %s47
    %p51 = scmp.eq.s32.totalorder %s11, 0
    %p52 = por %p50, %p51
    %p53 = scmp.ne.s32.totalorder %s45, %s47
    %p54 = scmp.eq.s32.totalorder %s16, 1
    %p55 = por %p53, %p54
    %p56 = scmp.ne.s32.totalorder %s47, %s48
    %p57 = scmp.eq.s32.totalorder %s16, 0
    %p58 = por %p56, %p57
    %p59 = scmp.ne.s32.totalorder %s47, %s48
    %p60 = scmp.eq.s32.totalorder %s17, 1
    %p61 = por %p59, %p60
    %p63 = scmp.ne.s32.totalorder %s48, %s62
    %p64 = scmp.eq.s32.totalorder %s17, 0
    %p65 = por %p63, %p64
    %s67 = sadd.s32 %s66, 1
    %p70 = scmp.eq.s32.totalorder %s11, 1
    %p71 = scmp.ne.s32.totalorder %s66, %s68
    %p72 = scmp.eq.s32.totalorder %s11, 0
    %p73 = por %p71, %p72
    %p74 = scmp.ne.s32.totalorder %s66, %s68
    %p75 = scmp.eq.s32.totalorder %s16, 1
    %p76 = por %p74, %p75
    %p77 = scmp.ne.s32.totalorder %s68, %s69
    %p78 = scmp.eq.s32.totalorder %s16, 0
    %p79 = por %p77, %p78
    %p80 = scmp.ne.s32.totalorder %s68, %s69
    %p81 = scmp.eq.s32.totalorder %s17, 1
    %p82 = por %p80, %p81
    %p84 = scmp.ne.s32.totalorder %s69, %s83
    %p85 = scmp.eq.s32.totalorder %s17, 0
    %p86 = por %p84, %p85
    %s88 = sadd.s32 %s87, 1
    %p91 = scmp.eq.s32.totalorder %s11, 1
    %p92 = scmp.ne.s32.totalorder %s87, %s89
    %p93 = scmp.eq.s32.totalorder %s11, 0
    %p94 = por %p92, %p93
    %p95 = scmp.ne.s32.totalorder %s87, %s89
    %p96 = scmp.eq.s32.totalorder %s16, 1
    %p97 = por %p95, %p96
    %p98 = scmp.ne.s32.totalorder %s89, %s90
    %p99 = scmp.eq.s32.totalorder %s16, 0
    %p100 = por %p98, %p99
    %p101 = scmp.ne.s32.totalorder %s89, %s90
    %p102 = scmp.eq.s32.totalorder %s17, 1
    %p103 = por %p101, %p102
    %p105 = scmp.ne.s32.totalorder %s90, %s104
    %p106 = scmp.eq.s32.totalorder %s17, 0
    %p107 = por %p105, %p106
    %s109 = sadd.s32 %s108, 1
    %p112 = scmp.eq.s32.totalorder %s11, 1
    %p113 = scmp.ne.s32.totalorder %s108, %s110
    %p114 = scmp.eq.s32.totalorder %s11, 0
    %p115 = por %p113, %p114
    %p116 = scmp.ne.s32.totalorder %s108, %s110
    %p117 = scmp.eq.s32.totalorder %s16, 1
    %p118 = por %p116, %p117
    %p119 = scmp.ne.s32.totalorder %s110, %s111
    %p120 = scmp.eq.s32.totalorder %s16, 0
    %p121 = por %p119, %p120
    %p122 = scmp.ne.s32.totalorder %s110, %s111
    %p123 = scmp.eq.s32.totalorder %s17, 1
    %p124 = por %p122, %p123
    %p126 = scmp.ne.s32.totalorder %s111, %s125
    %p127 = scmp.eq.s32.totalorder %s17, 0
    %p128 = por %p126, %p127
    %s129 = ssub.s32 %s11, %s18
    %p130 = scmp.eq.s32.totalorder %s129, 0
    %s132 = sadd.s32 %s131, 1
    %s133 = scalar_select %p130, %s131, %s132
    %p136 = pneg %p130
    %p137 = scmp.eq.s32.totalorder %s11, 1
    %p138 = por %p136, %p137
    %p139 = scmp.ne.s32.totalorder %s131, %s134
    %p140 = scmp.eq.s32.totalorder %s11, 0
    %p141 = por %p139, %p140
    %p142 = scmp.ne.s32.totalorder %s131, %s134
    %p143 = scmp.eq.s32.totalorder %s16, 1
    %p144 = por %p142, %p143
    %p145 = scmp.ne.s32.totalorder %s134, %s135
    %p146 = scmp.eq.s32.totalorder %s16, 0
    %p147 = por %p145, %p146
    %p148 = scmp.ne.s32.totalorder %s134, %s135
    %p149 = scmp.eq.s32.totalorder %s17, 1
    %p150 = por %p148, %p149
    %p152 = scmp.ne.s32.totalorder %s135, %s151
    %p153 = scmp.eq.s32.totalorder %s17, 0
    %p154 = por %p152, %p153
    %p155 = scmp.le.s32.totalorder 1, %s11
    %p156 = scmp.lt.s32.totalorder %s11, 3
    %p157 = pnand %p155, %p156
    %p158 = pneg %p157
    // Predicated region
    $region9: #{block_forward.1} parent=5 // pred_check
      _
    $region10: #{block_forward.1} parent=5 // pred_check_branch
      %160 = sbr.rel (%p157) target = $region12
    $region11: #{block_forward.1} parent=5 // pred_region
      %s161 = ssub.s32 %s11, 1
      // Predicated region
      $region13: #{block_forward.1} parent=11 // pred_check
        %p162 = pneg %p58
      $region14: #{block_forward.1} parent=11 // pred_check_branch
        %164 = sbr.rel (%p162) target = $region16
      $region15: #{block_forward.1} parent=11 // pred_region
        _
      $region16: #{block_forward.1} parent=11 // pred_fallthru
        _
      // Predicated region
      $region17: #{block_forward.1} parent=11 // pred_check
        %p165 = pneg %p79
      $region18: #{block_forward.1} parent=11 // pred_check_branch
        %167 = sbr.rel (%p165) target = $region20
      $region19: #{block_forward.1} parent=11 // pred_region
        _
      $region20: #{block_forward.1} parent=11 // pred_fallthru
        _
      // Predicated region
      $region21: #{block_forward.1} parent=11 // pred_check
        %p168 = pneg %p100
      $region22: #{block_forward.1} parent=11 // pred_check_branch
        %170 = sbr.rel (%p168) target = $region24
      $region23: #{block_forward.1} parent=11 // pred_region
        _
      $region24: #{block_forward.1} parent=11 // pred_fallthru
        _
      // Predicated region
      $region25: #{block_forward.1} parent=11 // pred_check
        %p171 = pneg %p121
      $region26: #{block_forward.1} parent=11 // pred_check_branch
        %173 = sbr.rel (%p171) target = $region28
      $region27: #{block_forward.1} parent=11 // pred_region
        _
      $region28: #{block_forward.1} parent=11 // pred_fallthru
        _
    $region12: #{block_forward.1} parent=5 // pred_fallthru
      _
    %p174 = scmp.lt.s32.totalorder %s11, 2
    // Predicated region
    $region29: #{block_forward.1} parent=5 // pred_check
      %p175 = pneg %p174
    $region30: #{block_forward.1} parent=5 // pred_check_branch
      %177 = sbr.rel (%p175) target = $region32
    $region31: #{block_forward.1} parent=5 // pred_region
      // Predicated region
      $region33: #{block_forward.1} parent=31 // pred_check
        %p178 = pneg %p31
      $region34: #{block_forward.1} parent=31 // pred_check_branch
        %180 = sbr.rel (%p178) target = $region36
      $region35: #{block_forward.1} parent=31 // pred_region
        %s181 = smul.u32 4, %s11
        %p182 = scmp.lt.s32.totalorder %s181, 7
        %s183 = scalar_select %p182, %s181, 7
        %s184 = smul.addr %s183, 8
        %s185 = scalar_lea.vmem %s0, %s184
        %s186 = smul.u32 4, %s11
      $region36: #{block_forward.1} parent=31 // pred_fallthru
        _
    $region32: #{block_forward.1} parent=5 // pred_fallthru
      _
    %p187 = scmp.le.s32.totalorder 1, %s11
    %p188 = scmp.lt.s32.totalorder %s11, 3
    %p189 = pnand %p187, %p188
    %p190 = pneg %p189
    // Predicated region
    $region37: #{block_forward.1} parent=5 // pred_check
      _
    $region38: #{block_forward.1} parent=5 // pred_check_branch
      %192 = sbr.rel (%p189) target = $region40
    $region39: #{block_forward.1} parent=5 // pred_region
      %s193 = ssub.s32 %s11, 1
      %s194 = smul.u32 4, %s16
      %p195 = scmp.lt.s32.totalorder %s194, 7
      %s196 = scalar_select %p195, %s194, 7
      %s197 = smul.addr %s196, 8
      %s198 = scalar_lea.vmem %s0, %s197
      %p199 = pneg %p37
      %p200 = pneg %p34
      %p201 = pneg %p58
      %p202 = pneg %p55
      %p203 = pneg %p79
      %p204 = pneg %p76
      %p205 = pneg %p100
      %p206 = pneg %p97
      %p207 = pneg %p121
      %p208 = pneg %p118
      %p209 = pneg %p147
      %p210 = pneg %p144
      %s211 = smul.u32 4, %s16
      %p212 = scmp.lt.s32.totalorder %s211, 7
      %s213 = scalar_select %p212, %s211, 7
      %s214 = smul.addr %s213, 8
      %s215 = scalar_lea.vmem %s5, %s214
      %s216 = smul.u32 4, %s16
      %p217 = scmp.lt.s32.totalorder %s216, 7
      %s218 = scalar_select %p217, %s216, 7
      %s219 = smul.addr %s218, 8
      %s220 = scalar_lea.vmem %s0, %s219
      %s221 = smul.u32 4, %s16
      %s222 = smul.u32 4, %s16
      %p223 = scmp.lt.s32.totalorder %s222, 7
      %s224 = scalar_select %p223, %s222, 7
      %s225 = smul.addr %s224, 8
      %s226 = scalar_lea.vmem %s5, %s225
      %s227 = smul.u32 4, %s16
      %v228 = vld [vmem:[%s220] sm:$0xff]
      %v229 = vld [vmem:[%s220 + $0x8] sm:$0xff]
      %v230 = vld [vmem:[%s220 + $0x10] sm:$0xff]
      %v231 = vld [vmem:[%s220 + $0x18] sm:$0xff]
      %v232 = vld [vmem:[%s1] sm:$0xff]
      %v233 = vld [vmem:[%s1 + $0x8] sm:$0xff]
      %v234 = vld [vmem:[%s1 + $0x10] sm:$0xff]
      %v235 = vld [vmem:[%s1 + $0x18] sm:$0xff]
      %v236 = vld [vmem:[%s1 + $0x20] sm:$0xff]
      %v237 = vld [vmem:[%s1 + $0x28] sm:$0xff]
      %v238 = vld [vmem:[%s1 + $0x30] sm:$0xff]
      %v239 = vld [vmem:[%s1 + $0x38] sm:$0xff]
      %v240 = vld [vmem:[%s1 + $0x40] sm:$0xff]
      %v241 = vld [vmem:[%s1 + $0x48] sm:$0xff]
      %v242 = vld [vmem:[%s1 + $0x50] sm:$0xff]
      %v243 = vld [vmem:[%s1 + $0x58] sm:$0xff]
      %v244 = vld [vmem:[%s1 + $0x60] sm:$0xff]
      %v245 = vld [vmem:[%s1 + $0x68] sm:$0xff]
      %v246 = vld [vmem:[%s1 + $0x70] sm:$0xff]
      %v247 = vld [vmem:[%s1 + $0x78] sm:$0xff]
      %v248 = vld [vmem:[%s2] sm:$0x1]
      %v250 = vperm.slane %v248, 0
      %252 = vmatpush.msra.mxu0 %v247
      %253 = vmatpush.msra.mxu0 %v246
      %254 = vmatpush.msra.mxu0 %v245
      %255 = vmatpush.msra.mxu0 %v244
      %256 = vmatpush.msra.mxu0 %v243
      %257 = vmatpush.msra.mxu0 %v242
      %258 = vmatpush.msra.mxu0 %v241
      %259 = vmatpush.msra.mxu0 %v240
      %260 = vmatpush.msra.mxu0 %v239
      %261 = vmatpush.msra.mxu0 %v238
      %262 = vmatpush.msra.mxu0 %v237
      %263 = vmatpush.msra.mxu0 %v236
      %264 = vmatpush.msra.mxu0 %v235
      %265 = vmatpush.msra.mxu0 %v234
      %266 = vmatpush.msra.mxu0 %v233
      %267 = vmatpush.msra.mxu0 %v232
      %268 = vmatmul.f32.gmra.mxu0 %v228
      %v269 = vpop.f32.mrf.mxu0
      %v270 = vadd.f32 %v250, %v269
      %271 = vmatmul.f32.gmra.mxu0 %v229
      %v272 = vpop.f32.mrf.mxu0
      %v273 = vadd.f32 %v250, %v272
      %274 = vmatmul.f32.gmra.mxu0 %v230
      %v275 = vpop.f32.mrf.mxu0
      %v276 = vadd.f32 %v250, %v275
      %277 = vmatmul.f32.gmra.mxu0 %v231
      %v278 = vpop.f32.mrf.mxu0
      %v279 = vadd.f32 %v250, %v278
      %280 = vdwg.mxu0
      %v281 = vtanh.pop %v270
      %v282 = vtanh.pop %v273
      %v283 = vtanh.pop %v276
      %v284 = vtanh.pop %v279
      %v285 = vld [vmem:[%s3] sm:$0xff]
      %v286 = vld [vmem:[%s3 + $0x8] sm:$0xff]
      %v287 = vld [vmem:[%s3 + $0x10] sm:$0xff]
      %v288 = vld [vmem:[%s3 + $0x18] sm:$0xff]
      %v289 = vld [vmem:[%s3 + $0x20] sm:$0xff]
      %v290 = vld [vmem:[%s3 + $0x28] sm:$0xff]
      %v291 = vld [vmem:[%s3 + $0x30] sm:$0xff]
      %v292 = vld [vmem:[%s3 + $0x38] sm:$0xff]
      %v293 = vld [vmem:[%s3 + $0x40] sm:$0xff]
      %v294 = vld [vmem:[%s3 + $0x48] sm:$0xff]
      %v295 = vld [vmem:[%s3 + $0x50] sm:$0xff]
      %v296 = vld [vmem:[%s3 + $0x58] sm:$0xff]
      %v297 = vld [vmem:[%s3 + $0x60] sm:$0xff]
      %v298 = vld [vmem:[%s3 + $0x68] sm:$0xff]
      %v299 = vld [vmem:[%s3 + $0x70] sm:$0xff]
      %v300 = vld [vmem:[%s3 + $0x78] sm:$0xff]
      %v301 = vld [vmem:[%s4] sm:$0x1]
      %v303 = vperm.slane %v301, 0
      %305 = vmatpush.msra.mxu0 %v300
      %306 = vmatpush.msra.mxu0 %v299
      %307 = vmatpush.msra.mxu0 %v298
      %308 = vmatpush.msra.mxu0 %v297
      %309 = vmatpush.msra.mxu0 %v296
      %310 = vmatpush.msra.mxu0 %v295
      %311 = vmatpush.msra.mxu0 %v294
      %312 = vmatpush.msra.mxu0 %v293
      %313 = vmatpush.msra.mxu0 %v292
      %314 = vmatpush.msra.mxu0 %v291
      %315 = vmatpush.msra.mxu0 %v290
      %316 = vmatpush.msra.mxu0 %v289
      %317 = vmatpush.msra.mxu0 %v288
      %318 = vmatpush.msra.mxu0 %v287
      %319 = vmatpush.msra.mxu0 %v286
      %320 = vmatpush.msra.mxu0 %v285
      %321 = vmatmul.f32.gmra.mxu0 %v281
      %v322 = vpop.f32.mrf.mxu0
      %v323 = vadd.f32 %v303, %v322
      %324 = vmatmul.f32.gmra.mxu0 %v282
      %v325 = vpop.f32.mrf.mxu0
      %v326 = vadd.f32 %v303, %v325
      %327 = vmatmul.f32.gmra.mxu0 %v283
      %v328 = vpop.f32.mrf.mxu0
      %v329 = vadd.f32 %v303, %v328
      %330 = vmatmul.f32.gmra.mxu0 %v284
      %v331 = vpop.f32.mrf.mxu0
      %v332 = vadd.f32 %v303, %v331
      %333 = vdwg.mxu0
      %v334 = vtanh.pop %v323
      %v335 = vtanh.pop %v326
      %v336 = vtanh.pop %v329
      %v337 = vtanh.pop %v332
      %v338 = vadd.f32 %v334, %v228
      %v339 = vadd.f32 %v335, %v229
      %v340 = vadd.f32 %v336, %v230
      %v341 = vadd.f32 %v337, %v231
      %342 = vst [vmem:[%s226] sm:$0xff] %v338
      %343 = vst [vmem:[%s226 + $0x8] sm:$0xff] %v339
      %344 = vst [vmem:[%s226 + $0x10] sm:$0xff] %v340
      %345 = vst [vmem:[%s226 + $0x18] sm:$0xff] %v341
      %s346 = smul.u32 4, %s16
      %p347 = scmp.lt.s32.totalorder %s346, 7
      %s348 = scalar_select %p347, %s346, 7
      %s349 = smul.addr %s348, 8
      %s350 = scalar_lea.vmem %s5, %s349
      // Predicated region
      $region41: #{block_forward.1} parent=39 // pred_check
        %p351 = pneg %p144
      $region42: #{block_forward.1} parent=39 // pred_check_branch
        %353 = sbr.rel (%p351) target = $region44
      $region43: #{block_forward.1} parent=39 // pred_region
        %s354 = smul.u32 4, %s16
      $region44: #{block_forward.1} parent=39 // pred_fallthru
        _
    $region40: #{block_forward.1} parent=5 // pred_fallthru
      _
    %p355 = scmp.le.s32.totalorder 2, %s11
    // Predicated region
    $region45: #{block_forward.1} parent=5 // pred_check
      %p356 = pneg %p355
    $region46: #{block_forward.1} parent=5 // pred_check_branch
      %358 = sbr.rel (%p356) target = $region48
    $region47: #{block_forward.1} parent=5 // pred_region
      %s359 = ssub.s32 %s11, 2
      // Predicated region
      $region49: #{block_forward.1} parent=47 // pred_check
        %p360 = pneg %p150
      $region50: #{block_forward.1} parent=47 // pred_check_branch
        %362 = sbr.rel (%p360) target = $region52
      $region51: #{block_forward.1} parent=47 // pred_region
        %s363 = smul.u32 4, %s17
        %p364 = scmp.lt.s32.totalorder %s363, 7
        %s365 = scalar_select %p364, %s363, 7
        %s366 = smul.addr %s365, 8
        %s367 = scalar_lea.vmem %s5, %s366
      $region52: #{block_forward.1} parent=47 // pred_fallthru
        _
    $region48: #{block_forward.1} parent=5 // pred_fallthru
      _
  $region6: #{block_forward.1} parent=0 // loop_footer
    %s15 = sadd.s32 1, %s11
  $region7: #{block_forward.1} parent=0 // loop_footer_branch
    %10 = sbr.rel target = $region3
  $region8: #{block_forward.1} parent=0 // loop_exit
    _

</llo_original>
